<compile_context>
chip_gen: v7x
topology: tpu7x:2x2x1
jax: 0.10.0
libtpu: 0.0.40
codegen_flags: <defaults>
</compile_context>

<pallas_src>
import math

import jax
import jax.numpy as jnp
from jax.experimental import pallas as pl
from jax.experimental.pallas import tpu as pltpu


def npu_kernel(x_ref, gate_ref, w_ref, cvec_ref, sbias_ref, out_ref):
    """One batch tile.

    x_ref     : (TB, S)  input tile (streamed)
    gate_ref  : (1, S)   gate parameter      (VMEM-resident across the grid)
    w_ref     : (S, 2R)  W parameter          (VMEM-resident across the grid)
    cvec_ref  : (1, 2R)  cos(pi*sum(W,0)) * combine_w   (precomputed, resident)
    sbias_ref : (1,)     combine_bias + module_bias      (SMEM scalar)
    out_ref   : (TB, 2)  [sigmoid(z), 1 - sigmoid(z)]
    """
    # g = clamp(gate, 0, 1);  r = g * (|x| + 1e-3) + (1 - g)  >  0 always.
    g = jnp.clip(gate_ref[...], 0.0, 1.0)
    r = g * (jnp.abs(x_ref[...]) + 0.001) + (1.0 - g)          # (TB, S)

    # Single MXU pass: log(r) @ W, full-precision f32 accumulation.
    lrw = jnp.dot(
        jnp.log(r), w_ref[...],
        preferred_element_type=jnp.float32,
        precision=jax.lax.Precision.HIGHEST,
    )                                                          # (TB, 2R)

    # combine Linear(2R -> 1) with the cos term pre-folded into cvec:
    # VPU multiply + lane reduction, plus the fused scalar bias, sigmoid.
    z = jnp.sum(jnp.exp(lrw) * cvec_ref[...], axis=-1, keepdims=True)
    z = z + sbias_ref[0]                                       # (TB, 1)
    out = jax.nn.sigmoid(z)

    # cat([out, 1 - out], dim=1) via two direct sliced stores.
    out_ref[:, 0:1] = out
    out_ref[:, 1:2] = 1.0 - out


def npu_forward(x, gate, W, combine_w, combine_b, bias, *, tb=None):
    """x:(B,S) gate:(1,S) W:(S,2R) combine_w:(1,2R) combine_b:(1,1) bias:(1,1)."""
    B, S = x.shape
    R2 = W.shape[1]

    # Hoisted parameter-only work (once per call, never per grid step):
    # cos(k @ W) == cos(pi * sum(W, 0)) because r > 0 (see kernel header),
    # folded together with the combine weight into one (1, 2R) vector.
    cvec = jnp.cos(math.pi * jnp.sum(W, axis=0, keepdims=True)) * combine_w
    # Fuse the two (1,1) biases into a single 1-D f32 SMEM scalar.
    sbias = (combine_b + bias).reshape((1,)).astype(jnp.float32)

    # Batch tile: full batch when small, otherwise 1024 rows (multiple of 8,
    # 1024*32*4 B = 128 KiB per x tile — trivially double-buffered in VMEM).
    if tb is None:
        tb = B if B <= 1024 else 1024
    grid = (pl.cdiv(B, tb),)

    return pl.pallas_call(
        npu_kernel,
        out_shape=jax.ShapeDtypeStruct((B, 2), jnp.float32),
        grid=grid,
        in_specs=[
            pl.BlockSpec((tb, S), lambda i: (i, 0)),            # x: streamed
            pl.BlockSpec((1, S), lambda i: (0, 0)),             # gate: resident
            pl.BlockSpec((S, R2), lambda i: (0, 0)),            # W: resident
            pl.BlockSpec((1, R2), lambda i: (0, 0)),            # cvec: resident
            pl.BlockSpec(memory_space=pltpu.MemorySpace.SMEM),  # fused bias
        ],
        out_specs=pl.BlockSpec((tb, 2), lambda i: (i, 0)),
        compiler_params=pltpu.CompilerParams(
            dimension_semantics=("parallel",)),
    )(x, gate, W, cvec, sbias)


def npu_reference(x, gate, W, combine_w, combine_b, bias):
    """Pure-JAX mirror of the PyTorch forward (generic k path kept)."""
    hi = jax.lax.Precision.HIGHEST
    g = jnp.clip(gate, 0.0, 1.0)
    r = jnp.abs(x) + 0.001
    r = g * r + (1.0 - g)
    k = jnp.maximum(jnp.sign(r), jnp.zeros_like(r)) * math.pi
    h = (jnp.exp(jnp.dot(jnp.log(r), W, precision=hi))
         * jnp.cos(jnp.dot(k, W, precision=hi)))
    out = jax.nn.sigmoid(bias[0, 0]
                         + (jnp.dot(h, combine_w.T, precision=hi)
                            + combine_b[0, 0]))
    return jnp.concatenate([out, 1.0 - out], axis=1)


if __name__ == "__main__":
    B = 8            # batch
    STORAGE = 32     # storage_size
    REDUNDANCY = 16  # -> 2 * redundancy = 32

    key = jax.random.PRNGKey(0)
    kx, kw, kcw, kcb = jax.random.split(key, 4)

    # input
    x = jax.random.normal(kx, (B, STORAGE), dtype=jnp.float32)

    # parameters (mirroring the PyTorch __init__ shapes / init)
    bias = jnp.zeros((1, 1), dtype=jnp.float32)                       # zeros(1,1)
    gate = jnp.ones((1, STORAGE), dtype=jnp.float32) * 0.5            # ones*0.5
    xavier_std = math.sqrt(2.0 / (STORAGE + 2 * REDUNDANCY))          # xavier_normal_
    W = jax.random.normal(kw, (STORAGE, 2 * REDUNDANCY), dtype=jnp.float32) * xavier_std
    lim = 1.0 / math.sqrt(2 * REDUNDANCY)                             # nn.Linear init
    combine_w = jax.random.uniform(kcw, (1, 2 * REDUNDANCY), dtype=jnp.float32,
                                   minval=-lim, maxval=lim)
    combine_b = jax.random.uniform(kcb, (1, 1), dtype=jnp.float32,
                                   minval=-lim, maxval=lim)

    out = npu_forward(x, gate, W, combine_w, combine_b, bias)
    out = jax.block_until_ready(out)

    ref = npu_reference(x, gate, W, combine_w, combine_b, bias)
    assert out.shape == (B, 2)
    assert bool(jnp.allclose(out, ref, rtol=1e-5, atol=1e-5)), (out, ref)

    print("KERNEL_OK")
</pallas_src>

<mosaic_0001>
module attributes {stable_mosaic.version = 11 : i64} {
  func.func @npu_kernel(%arg0: i32, %arg1: memref<8x32xf32, #tpu.memory_space<vmem>>, %arg2: memref<1x32xf32, #tpu.memory_space<vmem>>, %arg3: memref<32x32xf32, #tpu.memory_space<vmem>>, %arg4: memref<1x32xf32, #tpu.memory_space<vmem>>, %arg5: memref<1xf32, #tpu.memory_space<smem>>, %arg6: memref<8x2xf32, #tpu.memory_space<vmem>>) attributes {dimension_semantics = [#tpu.dimension_semantics<parallel>], iteration_bounds = array<i64: 1>, scalar_prefetch = 0 : i64, scratch_operands = 0 : i64, tpu.core_type = #tpu.core_type<tc>, window_params = [{transform_indices = @transform_0, window_bounds = array<i64: 8, 32>}, {pipeline_mode = #tpu.pipeline_mode<synchronous>, transform_indices = @transform_1, window_bounds = array<i64: 1, 32>}, {pipeline_mode = #tpu.pipeline_mode<synchronous>, transform_indices = @transform_2, window_bounds = array<i64: 32, 32>}, {pipeline_mode = #tpu.pipeline_mode<synchronous>, transform_indices = @transform_3, window_bounds = array<i64: 1, 32>}, {transform_indices = @transform_4, window_bounds = array<i64: 1>}, {transform_indices = @transform_5, window_bounds = array<i64: 8, 2>}]} {
    %c0 = arith.constant 0 : index
    %c0_0 = arith.constant 0 : index
    %0 = vector.load %arg2[%c0, %c0_0] : memref<1x32xf32, #tpu.memory_space<vmem>>, vector<1x32xf32>
    %cst = arith.constant 0.000000e+00 : f32
    %cst_1 = arith.constant 1.000000e+00 : f32
    %1 = vector.broadcast %cst : f32 to vector<1x32xf32>
    %2 = arith.maximumf %1, %0 : vector<1x32xf32>
    %3 = vector.broadcast %cst_1 : f32 to vector<1x32xf32>
    %4 = arith.minimumf %3, %2 : vector<1x32xf32>
    %c0_2 = arith.constant 0 : index
    %c0_3 = arith.constant 0 : index
    %5 = vector.load %arg1[%c0_2, %c0_3] : memref<8x32xf32, #tpu.memory_space<vmem>>, vector<8x32xf32>
    %6 = math.absf %5 : vector<8x32xf32>
    %cst_4 = arith.constant 1.000000e-03 : f32
    %7 = vector.broadcast %cst_4 : f32 to vector<8x32xf32>
    %8 = arith.addf %6, %7 : vector<8x32xf32>
    %9 = vector.broadcast %4 : vector<1x32xf32> to vector<8x32xf32>
    %10 = arith.mulf %9, %8 : vector<8x32xf32>
    %cst_5 = arith.constant 1.000000e+00 : f32
    %11 = vector.broadcast %cst_5 : f32 to vector<1x32xf32>
    %12 = arith.subf %11, %4 : vector<1x32xf32>
    %13 = vector.broadcast %12 : vector<1x32xf32> to vector<8x32xf32>
    %14 = arith.addf %10, %13 : vector<8x32xf32>
    %15 = math.log %14 : vector<8x32xf32>
    %c0_6 = arith.constant 0 : index
    %c0_7 = arith.constant 0 : index
    %16 = vector.load %arg3[%c0_6, %c0_7] : memref<32x32xf32, #tpu.memory_space<vmem>>, vector<32x32xf32>
    %cst_8 = arith.constant dense<0.000000e+00> : vector<8x32xf32>
    %17 = tpu.matmul %15, %16, %cst_8 {dimension_numbers = #tpu.dot_dimension_numbers<[1], [0], [0], [1], [0, 0, 1, 1], [], []>, precision = #tpu.contract_precision<fp32>} : vector<8x32xf32>, vector<32x32xf32>, vector<8x32xf32> -> vector<8x32xf32>
    %18 = math.exp %17 : vector<8x32xf32>
    %c0_9 = arith.constant 0 : index
    %c0_10 = arith.constant 0 : index
    %19 = vector.load %arg4[%c0_9, %c0_10] : memref<1x32xf32, #tpu.memory_space<vmem>>, vector<1x32xf32>
    %20 = vector.broadcast %19 : vector<1x32xf32> to vector<8x32xf32>
    %21 = arith.mulf %18, %20 : vector<8x32xf32>
    %cst_11 = arith.constant dense<0.000000e+00> : vector<8xf32>
    %22 = vector.multi_reduction <add>, %21, %cst_11 [1] : vector<8x32xf32> to vector<8xf32>
    %23 = vector.shape_cast %22 : vector<8xf32> to vector<8x1xf32>
    %c0_12 = arith.constant 0 : index
    %24 = memref.load %arg5[%c0_12] : memref<1xf32, #tpu.memory_space<smem>>
    %25 = vector.broadcast %24 : f32 to vector<8x1xf32>
    %26 = arith.addf %23, %25 : vector<8x1xf32>
    %27 = arith.negf %26 : vector<8x1xf32>
    %28 = math.exp %27 : vector<8x1xf32>
    %cst_13 = arith.constant 1.000000e+00 : f32
    %29 = vector.broadcast %cst_13 : f32 to vector<8x1xf32>
    %30 = arith.addf %29, %28 : vector<8x1xf32>
    %31 = arith.divf %29, %30 : vector<8x1xf32>
    %c0_14 = arith.constant 0 : index
    %c0_15 = arith.constant 0 : index
    %32 = vector.load %arg6[%c0_14, %c0_15] : memref<8x2xf32, #tpu.memory_space<vmem>>, vector<8x1xf32>
    tpu.vector_store %arg6[%c0_14, %c0_15], %31 {strides = array<i32>} : memref<8x2xf32, #tpu.memory_space<vmem>>, vector<8x1xf32>,
    %cst_16 = arith.constant 1.000000e+00 : f32
    %33 = vector.broadcast %cst_16 : f32 to vector<8x1xf32>
    %34 = arith.subf %33, %31 : vector<8x1xf32>
    %c0_17 = arith.constant 0 : index
    %c1 = arith.constant 1 : index
    %35 = vector.load %arg6[%c0_17, %c1] : memref<8x2xf32, #tpu.memory_space<vmem>>, vector<8x1xf32>
    tpu.vector_store %arg6[%c0_17, %c1], %34 {strides = array<i32>} : memref<8x2xf32, #tpu.memory_space<vmem>>, vector<8x1xf32>,
    return
  }
  func.func @transform_0(%arg0: i32) -> (i32, i32) {
    %c0_i32 = arith.constant 0 : i32
    %c0_i32_0 = arith.constant 0 : i32
    return %arg0, %c0_i32 : i32, i32
  }
  func.func @transform_1(%arg0: i32) -> (i32, i32) {
    %c0_i32 = arith.constant 0 : i32
    %c0_i32_0 = arith.constant 0 : i32
    %c0_i32_1 = arith.constant 0 : i32
    return %c0_i32, %c0_i32_0 : i32, i32
  }
  func.func @transform_2(%arg0: i32) -> (i32, i32) {
    %c0_i32 = arith.constant 0 : i32
    %c0_i32_0 = arith.constant 0 : i32
    %c0_i32_1 = arith.constant 0 : i32
    return %c0_i32, %c0_i32_0 : i32, i32
  }
  func.func @transform_3(%arg0: i32) -> (i32, i32) {
    %c0_i32 = arith.constant 0 : i32
    %c0_i32_0 = arith.constant 0 : i32
    %c0_i32_1 = arith.constant 0 : i32
    return %c0_i32, %c0_i32_0 : i32, i32
  }
  func.func @transform_4(%arg0: i32) -> i32 {
    %c0_i32 = arith.constant 0 : i32
    %c0_i32_0 = arith.constant 0 : i32
    return %c0_i32 : i32
  }
  func.func @transform_5(%arg0: i32) -> (i32, i32) {
    %c0_i32 = arith.constant 0 : i32
    %c0_i32_0 = arith.constant 0 : i32
    return %arg0, %c0_i32 : i32, i32
  }
}

</mosaic_0001>

<llo_original>
// kernel: tpu_custom_call.1
$region0: #{tpu_custom_call.1}
  #allocation0 [shape = 'u32[]', space=smem, size = 0x4, offset = 0x4, fixed_abs, tag = 'smem constant byte address 0x4 - core index']
  #allocation1 [shape = 'u32[144,128]{1,0:T(1,128)}', space=vmem, size = 0x12000, scoped, tag = 'internal scratch']
  #allocation2 [shape = 'f32[1]{0:T(128)S(6)}', space=smem, size = 0x200, scoped, tag = 'scoped memory for tpu_custom_call.1']
  %s0 = inlined_call_operand.hbm [shape: f32[8,32], index: 0, kind: input, shape index: {}]
  %s1 = inlined_call_operand.vmem [shape: f32[1,32], index: 1, kind: input, shape index: {}]
  %s2 = inlined_call_operand.hbm [shape: f32[32,32], index: 2, kind: input, shape index: {}]
  %s3 = inlined_call_operand.vmem [shape: f32[1,32], index: 3, kind: input, shape index: {}]
  %s4 = inlined_call_operand.<no memory space> [shape: f32[1], index: 4, kind: input, shape index: {}]
  %s5 = inlined_call_operand.vmem [shape: f32[8,2], index: 5, kind: output, shape index: {}]
  %s6 = sld [smem:[#allocation0]]
  $region38: #{tpu_custom_call.1} parent=0
    _
  %s8 = ssub.s32 1, %s6
  %s9 = scalar_select 0, %s8, %s6
  %10 = sst [smem:[#allocation2]] %s4
  $region1: #{tpu_custom_call.1} parent=0
    #allocation3 [shape = 'u8[4096]{0}', space=vmem, size = 0x1000, scoped, tag = 'input window, operand 0, single buffered']
    #allocation4 [shape = 's32[1]{0}', space=sflag, size = 0x4, scoped, tag = 'scoped memory for tpu_custom_call.1']
    #allocation5 [shape = 'u8[16384]{0}', space=vmem, size = 0x4000, scoped, tag = 'input window, operand 2, single buffered']
    #allocation6 [shape = 's32[1]{0}', space=sflag, size = 0x4, scoped, tag = 'scoped memory for tpu_custom_call.1']
    %11 = vsyncpa [#allocation4], 0
    %12 = vsyncpa [#allocation6], 0
    // Predicated region
    $region2: #{tpu_custom_call.1} parent=1 // pred_check
      _
    $region3: #{tpu_custom_call.1} parent=1 // pred_check_branch
      %14 = sbr.rel (0) target = $region5
    $region4: #{tpu_custom_call.1} parent=1 // pred_region
      %s16 = ssub.s32 128, 128
      %17 = vsyncadd [#allocation4], %s16
      %s19 = sshll.u32 [#allocation3], 4
      %s20 = int_to_ptr.vmem [resolvable:$true] %s19
      %22 = dma.hbm_to_vmem [thread:$0]  %s0, 128, %s20, [#allocation4]
    $region5: #{tpu_custom_call.1} parent=1 // pred_fallthru
      _
    // Predicated region
    $region6: #{tpu_custom_call.1} parent=1 // pred_check
      _
    $region7: #{tpu_custom_call.1} parent=1 // pred_check_branch
      %24 = sbr.rel (0) target = $region9
    $region8: #{tpu_custom_call.1} parent=1 // pred_region
      _
    $region9: #{tpu_custom_call.1} parent=1 // pred_fallthru
      _
    // Predicated region
    $region10: #{tpu_custom_call.1} parent=1 // pred_check
      _
    $region11: #{tpu_custom_call.1} parent=1 // pred_check_branch
      %26 = sbr.rel (0) target = $region13
    $region12: #{tpu_custom_call.1} parent=1 // pred_region
      %s28 = ssub.s32 512, 512
      %29 = vsyncadd [#allocation6], %s28
      %s30 = sshll.u32 [#allocation5], 4
      %s31 = int_to_ptr.vmem [resolvable:$true] %s30
      %36 = dma.hbm_to_vmem [thread:$0]  %s2, 512, %s31, [#allocation6], 128, 128, 8
    $region13: #{tpu_custom_call.1} parent=1 // pred_fallthru
      _
    // Predicated region
    $region14: #{tpu_custom_call.1} parent=1 // pred_check
      _
    $region15: #{tpu_custom_call.1} parent=1 // pred_check_branch
      %38 = sbr.rel (0) target = $region17
    $region16: #{tpu_custom_call.1} parent=1 // pred_region
      _
    $region17: #{tpu_custom_call.1} parent=1 // pred_fallthru
      _
    // Predicated region
    $region18: #{tpu_custom_call.1} parent=1 // pred_check
      _
    $region19: #{tpu_custom_call.1} parent=1 // pred_check_branch
      %40 = sbr.rel (0) target = $region21
    $region20: #{tpu_custom_call.1} parent=1 // pred_region
      _
    $region21: #{tpu_custom_call.1} parent=1 // pred_fallthru
      _
    // Predicated region
    $region22: #{tpu_custom_call.1} parent=1 // pred_check
      _
    $region23: #{tpu_custom_call.1} parent=1 // pred_check_branch
      %42 = sbr.rel (0) target = $region25
    $region24: #{tpu_custom_call.1} parent=1 // pred_region
      %43 = dma.done [#allocation4], 128
    $region25: #{tpu_custom_call.1} parent=1 // pred_fallthru
      _
    // Predicated region
    $region26: #{tpu_custom_call.1} parent=1 // pred_check
      _
    $region27: #{tpu_custom_call.1} parent=1 // pred_check_branch
      %45 = sbr.rel (0) target = $region29
    $region28: #{tpu_custom_call.1} parent=1 // pred_region
      %46 = dma.done [#allocation6], 512
    $region29: #{tpu_custom_call.1} parent=1 // pred_fallthru
      _
    %v47 = vld [vmem:[%s1] sm:$0x1]
    %v48 = vmax.f32 %v47, 0.0
    %v49 = vmin.f32 %v48, 1.0
    %v50 = vld [vmem:[#allocation3] sm:$0xff]
    %v51 = vand.u32 2147483647, %v50
    %v52 = vadd.f32 %v51, 0.001
    %v54 = vlaneseq
    %v55 = vshrl.u32 %v54, 7
    %v56 = vsub.s32 0, %v55
    %v57 = vrot.slane %v49, %v56
    %v59 = vmul.f32 %v57, %v52
    %v60 = vsub.f32 1.0, %v49
    %v62 = vlaneseq
    %v63 = vshrl.u32 %v62, 7
    %v64 = vsub.s32 0, %v63
    %v65 = vrot.slane %v60, %v64
    %v67 = vadd.f32 %v59, %v65
    %v68 = vlog2.pop %v67
    %v69 = vmul.f32 %v68, 0.6931472
    %v70 = vld [vmem:[#allocation5] sm:$0xff]
    %v71 = vld [vmem:[#allocation5 + $0x8] sm:$0xff]
    %v72 = vld [vmem:[#allocation5 + $0x10] sm:$0xff]
    %v73 = vld [vmem:[#allocation5 + $0x18] sm:$0xff]
    %vm74 = vcmask 261120
    %v76 = vsel %vm74, %v69, 0
    %78 = vmatprep.subr.mxu0 0.0
    %v79 = vand.u32 %v70, 4294901760
    %80 = vmatpush1.msra.mxu0 %v79
    %81 = vmatprep.subr.mxu0 0.0
    %v82 = vand.u32 %v71, 4294901760
    %83 = vmatpush1.msra.mxu0 %v82
    %84 = vmatprep.subr.mxu0 0.0
    %v85 = vand.u32 %v72, 4294901760
    %86 = vmatpush1.msra.mxu0 %v85
    %87 = vmatprep.subr.mxu0 0.0
    %v88 = vand.u32 %v73, 4294901760
    %89 = vmatpush1.msra.mxu0 %v88
    %90 = vmatprep.subr.mxu0 0.0
    %91 = vmatpush1.msra.mxu0 0.0
    %92 = vmatprep.subr.mxu0 0.0
    %93 = vmatpush1.msra.mxu0 0.0
    %94 = vmatprep.subr.mxu0 0.0
    %95 = vmatpush1.msra.mxu0 0.0
    %96 = vmatprep.subr.mxu0 0.0
    %97 = vmatpush1.msra.mxu0 0.0
    %98 = vmatprep.subr.mxu0 0.0
    %99 = vmatpush1.msra.mxu0 0.0
    %100 = vmatprep.subr.mxu0 0.0
    %101 = vmatpush1.msra.mxu0 0.0
    %102 = vmatprep.subr.mxu0 0.0
    %103 = vmatpush1.msra.mxu0 0.0
    %104 = vmatprep.subr.mxu0 0.0
    %105 = vmatpush1.msra.mxu0 0.0
    %106 = vmatprep.subr.mxu0 0.0
    %107 = vmatpush1.msra.mxu0 0.0
    %108 = vmatprep.subr.mxu0 0.0
    %109 = vmatpush1.msra.mxu0 0.0
    %110 = vmatprep.subr.mxu0 0.0
    %111 = vmatpush1.msra.mxu0 0.0
    %112 = vmatprep.subr.mxu0 0.0
    %113 = vmatpush1.msra.mxu0 0.0
    %114 = vmatprep.subr.mxu0 0.0
    %115 = vmatpush1.msra.mxu0 0.0
    %116 = vmatprep.subr.mxu0 0.0
    %117 = vmatpush1.msra.mxu0 0.0
    %118 = vmatprep.subr.mxu0 0.0
    %119 = vmatpush1.msra.mxu0 0.0
    %120 = vmatprep.subr.mxu0 0.0
    %121 = vmatpush1.msra.mxu0 0.0
    %122 = vmatprep.subr.mxu0 0.0
    %123 = vmatpush1.msra.mxu0 0.0
    %124 = vmatprep.subr.mxu0 0.0
    %125 = vmatpush1.msra.mxu0 0.0
    %126 = vmatprep.subr.mxu0 0.0
    %127 = vmatpush1.msra.mxu0 0.0
    %128 = vmatprep.subr.mxu0 0.0
    %129 = vmatpush1.msra.mxu0 0.0
    %130 = vmatprep.subr.mxu0 0.0
    %131 = vmatpush1.msra.mxu0 0.0
    %132 = vmatprep.subr.mxu0 0.0
    %133 = vmatpush1.msra.mxu0 0.0
    %134 = vmatprep.subr.mxu0 0.0
    %135 = vmatpush1.msra.mxu0 0.0
    %136 = vmatprep.subr.mxu0 0.0
    %137 = vmatpush1.msra.mxu0 0.0
    %138 = vmatprep.subr.mxu0 0.0
    %139 = vmatpush1.msra.mxu0 0.0
    %140 = vmatprep.subr.mxu0 0.0
    %141 = vmatpush1.msra.mxu0 0.0
    %142 = vmatprep.subr.mxu0 0.0
    %143 = vmatpush1.msra.mxu0 0.0
    %144 = vmatprep.subr.mxu0 0.0
    %145 = vmatpush1.msra.mxu0 0.0
    %146 = vmatprep.mubr.f32.mxu0 0.0
    %v147 = vand.u32 %v76, 4294901760
    %v148 = vsub.f32 %v76, %v147
    %v149 = vand.u32 %v148, 4294901760
    %v150 = vsub.f32 %v148, %v149
    %v151 = vand.u32 %v150, 4294901760
    %152 = vmatmul.mubr.f32.gmra.mrb[0].mxu0 %v151
    %v153 = vpop.f32.mrb[0].mxu0
    %v154 = vadd.f32 0.0, %v153
    %v155 = vpop.f32.mrb[0].mxu0
    %156 = vdwg.mxu0
    %157 = vmatprep.subr.mxu0 0.0
    %v158 = vand.u32 %v70, 4294901760
    %v159 = vsub.f32 %v70, %v158
    %v160 = vand.u32 %v159, 4294901760
    %v161 = vsub.f32 %v159, %v160
    %v162 = vand.u32 %v161, 4294901760
    %163 = vmatpush1.msra.mxu0 %v162
    %164 = vmatprep.subr.mxu0 0.0
    %v165 = vand.u32 %v71, 4294901760
    %v166 = vsub.f32 %v71, %v165
    %v167 = vand.u32 %v166, 4294901760
    %v168 = vsub.f32 %v166, %v167
    %v169 = vand.u32 %v168, 4294901760
    %170 = vmatpush1.msra.mxu0 %v169
    %171 = vmatprep.subr.mxu0 0.0
    %v172 = vand.u32 %v72, 4294901760
    %v173 = vsub.f32 %v72, %v172
    %v174 = vand.u32 %v173, 4294901760
    %v175 = vsub.f32 %v173, %v174
    %v176 = vand.u32 %v175, 4294901760
    %177 = vmatpush1.msra.mxu0 %v176
    %178 = vmatprep.subr.mxu0 0.0
    %v179 = vand.u32 %v73, 4294901760
    %v180 = vsub.f32 %v73, %v179
    %v181 = vand.u32 %v180, 4294901760
    %v182 = vsub.f32 %v180, %v181
    %v183 = vand.u32 %v182, 4294901760
    %184 = vmatpush1.msra.mxu0 %v183
    %185 = vmatprep.subr.mxu0 0.0
    %186 = vmatpush1.msra.mxu0 0.0
    %187 = vmatprep.subr.mxu0 0.0
    %188 = vmatpush1.msra.mxu0 0.0
    %189 = vmatprep.subr.mxu0 0.0
    %190 = vmatpush1.msra.mxu0 0.0
    %191 = vmatprep.subr.mxu0 0.0
    %192 = vmatpush1.msra.mxu0 0.0
    %193 = vmatprep.subr.mxu0 0.0
    %194 = vmatpush1.msra.mxu0 0.0
    %195 = vmatprep.subr.mxu0 0.0
    %196 = vmatpush1.msra.mxu0 0.0
    %197 = vmatprep.subr.mxu0 0.0
    %198 = vmatpush1.msra.mxu0 0.0
    %199 = vmatprep.subr.mxu0 0.0
    %200 = vmatpush1.msra.mxu0 0.0
    %201 = vmatprep.subr.mxu0 0.0
    %202 = vmatpush1.msra.mxu0 0.0
    %203 = vmatprep.subr.mxu0 0.0
    %204 = vmatpush1.msra.mxu0 0.0
    %205 = vmatprep.subr.mxu0 0.0
    %206 = vmatpush1.msra.mxu0 0.0
    %207 = vmatprep.subr.mxu0 0.0
    %208 = vmatpush1.msra.mxu0 0.0
    %209 = vmatprep.subr.mxu0 0.0
    %210 = vmatpush1.msra.mxu0 0.0
    %211 = vmatprep.subr.mxu0 0.0
    %212 = vmatpush1.msra.mxu0 0.0
    %213 = vmatprep.subr.mxu0 0.0
    %214 = vmatpush1.msra.mxu0 0.0
    %215 = vmatprep.subr.mxu0 0.0
    %216 = vmatpush1.msra.mxu0 0.0
    %217 = vmatprep.subr.mxu0 0.0
    %218 = vmatpush1.msra.mxu0 0.0
    %219 = vmatprep.subr.mxu0 0.0
    %220 = vmatpush1.msra.mxu0 0.0
    %221 = vmatprep.subr.mxu0 0.0
    %222 = vmatpush1.msra.mxu0 0.0
    %223 = vmatprep.subr.mxu0 0.0
    %224 = vmatpush1.msra.mxu0 0.0
    %225 = vmatprep.subr.mxu0 0.0
    %226 = vmatpush1.msra.mxu0 0.0
    %227 = vmatprep.subr.mxu0 0.0
    %228 = vmatpush1.msra.mxu0 0.0
    %229 = vmatprep.subr.mxu0 0.0
    %230 = vmatpush1.msra.mxu0 0.0
    %231 = vmatprep.subr.mxu0 0.0
    %232 = vmatpush1.msra.mxu0 0.0
    %233 = vmatprep.subr.mxu0 0.0
    %234 = vmatpush1.msra.mxu0 0.0
    %235 = vmatprep.subr.mxu0 0.0
    %236 = vmatpush1.msra.mxu0 0.0
    %237 = vmatprep.subr.mxu0 0.0
    %238 = vmatpush1.msra.mxu0 0.0
    %239 = vmatprep.subr.mxu0 0.0
    %240 = vmatpush1.msra.mxu0 0.0
    %241 = vmatprep.mubr.f32.mxu0 0.0
    %v242 = vand.u32 %v76, 4294901760
    %243 = vmatmul.mubr.f32.gmra.mrb[0].mxu0 %v242
    %v244 = vpop.f32.mrb[0].mxu0
    %v245 = vadd.f32 %v154, %v244
    %v246 = vpop.f32.mrb[0].mxu0
    %247 = vdwg.mxu0
    %248 = vmatprep.subr.mxu0 0.0
    %v249 = vand.u32 %v70, 4294901760
    %v250 = vsub.f32 %v70, %v249
    %251 = vmatpush1.msra.mxu0 %v250
    %252 = vmatprep.subr.mxu0 0.0
    %v253 = vand.u32 %v71, 4294901760
    %v254 = vsub.f32 %v71, %v253
    %255 = vmatpush1.msra.mxu0 %v254
    %256 = vmatprep.subr.mxu0 0.0
    %v257 = vand.u32 %v72, 4294901760
    %v258 = vsub.f32 %v72, %v257
    %259 = vmatpush1.msra.mxu0 %v258
    %260 = vmatprep.subr.mxu0 0.0
    %v261 = vand.u32 %v73, 4294901760
    %v262 = vsub.f32 %v73, %v261
    %263 = vmatpush1.msra.mxu0 %v262
    %264 = vmatprep.subr.mxu0 0.0
    %265 = vmatpush1.msra.mxu0 0.0
    %266 = vmatprep.subr.mxu0 0.0
    %267 = vmatpush1.msra.mxu0 0.0
    %268 = vmatprep.subr.mxu0 0.0
    %269 = vmatpush1.msra.mxu0 0.0
    %270 = vmatprep.subr.mxu0 0.0
    %271 = vmatpush1.msra.mxu0 0.0
    %272 = vmatprep.subr.mxu0 0.0
    %273 = vmatpush1.msra.mxu0 0.0
    %274 = vmatprep.subr.mxu0 0.0
    %275 = vmatpush1.msra.mxu0 0.0
    %276 = vmatprep.subr.mxu0 0.0
    %277 = vmatpush1.msra.mxu0 0.0
    %278 = vmatprep.subr.mxu0 0.0
    %279 = vmatpush1.msra.mxu0 0.0
    %280 = vmatprep.subr.mxu0 0.0
    %281 = vmatpush1.msra.mxu0 0.0
    %282 = vmatprep.subr.mxu0 0.0
    %283 = vmatpush1.msra.mxu0 0.0
    %284 = vmatprep.subr.mxu0 0.0
    %285 = vmatpush1.msra.mxu0 0.0
    %286 = vmatprep.subr.mxu0 0.0
    %287 = vmatpush1.msra.mxu0 0.0
    %288 = vmatprep.subr.mxu0 0.0
    %289 = vmatpush1.msra.mxu0 0.0
    %290 = vmatprep.subr.mxu0 0.0
    %291 = vmatpush1.msra.mxu0 0.0
    %292 = vmatprep.subr.mxu0 0.0
    %293 = vmatpush1.msra.mxu0 0.0
    %294 = vmatprep.subr.mxu0 0.0
    %295 = vmatpush1.msra.mxu0 0.0
    %296 = vmatprep.subr.mxu0 0.0
    %297 = vmatpush1.msra.mxu0 0.0
    %298 = vmatprep.subr.mxu0 0.0
    %299 = vmatpush1.msra.mxu0 0.0
    %300 = vmatprep.subr.mxu0 0.0
    %301 = vmatpush1.msra.mxu0 0.0
    %302 = vmatprep.subr.mxu0 0.0
    %303 = vmatpush1.msra.mxu0 0.0
    %304 = vmatprep.subr.mxu0 0.0
    %305 = vmatpush1.msra.mxu0 0.0
    %306 = vmatprep.subr.mxu0 0.0
    %307 = vmatpush1.msra.mxu0 0.0
    %308 = vmatprep.subr.mxu0 0.0
    %309 = vmatpush1.msra.mxu0 0.0
    %310 = vmatprep.subr.mxu0 0.0
    %311 = vmatpush1.msra.mxu0 0.0
    %312 = vmatprep.subr.mxu0 0.0
    %313 = vmatpush1.msra.mxu0 0.0
    %314 = vmatprep.subr.mxu0 0.0
    %315 = vmatpush1.msra.mxu0 0.0
    %316 = vmatprep.subr.mxu0 0.0
    %317 = vmatpush1.msra.mxu0 0.0
    %318 = vmatprep.subr.mxu0 0.0
    %319 = vmatpush1.msra.mxu0 0.0
    %320 = vmatprep.mubr.f32.mxu0 0.0
    %v321 = vand.u32 %v76, 4294901760
    %v322 = vsub.f32 %v76, %v321
    %323 = vmatmul.mubr.f32.gmra.mrb[0].mxu0 %v322
    %v324 = vpop.f32.mrb[0].mxu0
    %v325 = vadd.f32 %v245, %v324
    %v326 = vpop.f32.mrb[0].mxu0
    %327 = vdwg.mxu0
    %328 = vmatprep.subr.mxu0 0.0
    %v329 = vand.u32 %v70, 4294901760
    %330 = vmatpush1.msra.mxu0 %v329
    %331 = vmatprep.subr.mxu0 0.0
    %v332 = vand.u32 %v71, 4294901760
    %333 = vmatpush1.msra.mxu0 %v332
    %334 = vmatprep.subr.mxu0 0.0
    %v335 = vand.u32 %v72, 4294901760
    %336 = vmatpush1.msra.mxu0 %v335
    %337 = vmatprep.subr.mxu0 0.0
    %v338 = vand.u32 %v73, 4294901760
    %339 = vmatpush1.msra.mxu0 %v338
    %340 = vmatprep.subr.mxu0 0.0
    %341 = vmatpush1.msra.mxu0 0.0
    %342 = vmatprep.subr.mxu0 0.0
    %343 = vmatpush1.msra.mxu0 0.0
    %344 = vmatprep.subr.mxu0 0.0
    %345 = vmatpush1.msra.mxu0 0.0
    %346 = vmatprep.subr.mxu0 0.0
    %347 = vmatpush1.msra.mxu0 0.0
    %348 = vmatprep.subr.mxu0 0.0
    %349 = vmatpush1.msra.mxu0 0.0
    %350 = vmatprep.subr.mxu0 0.0
    %351 = vmatpush1.msra.mxu0 0.0
    %352 = vmatprep.subr.mxu0 0.0
    %353 = vmatpush1.msra.mxu0 0.0
    %354 = vmatprep.subr.mxu0 0.0
    %355 = vmatpush1.msra.mxu0 0.0
    %356 = vmatprep.subr.mxu0 0.0
    %357 = vmatpush1.msra.mxu0 0.0
    %358 = vmatprep.subr.mxu0 0.0
    %359 = vmatpush1.msra.mxu0 0.0
    %360 = vmatprep.subr.mxu0 0.0
    %361 = vmatpush1.msra.mxu0 0.0
    %362 = vmatprep.subr.mxu0 0.0
    %363 = vmatpush1.msra.mxu0 0.0
    %364 = vmatprep.subr.mxu0 0.0
    %365 = vmatpush1.msra.mxu0 0.0
    %366 = vmatprep.subr.mxu0 0.0
    %367 = vmatpush1.msra.mxu0 0.0
    %368 = vmatprep.subr.mxu0 0.0
    %369 = vmatpush1.msra.mxu0 0.0
    %370 = vmatprep.subr.mxu0 0.0
    %371 = vmatpush1.msra.mxu0 0.0
    %372 = vmatprep.subr.mxu0 0.0
    %373 = vmatpush1.msra.mxu0 0.0
    %374 = vmatprep.subr.mxu0 0.0
    %375 = vmatpush1.msra.mxu0 0.0
    %376 = vmatprep.subr.mxu0 0.0
    %377 = vmatpush1.msra.mxu0 0.0
    %378 = vmatprep.subr.mxu0 0.0
    %379 = vmatpush1.msra.mxu0 0.0
    %380 = vmatprep.subr.mxu0 0.0
    %381 = vmatpush1.msra.mxu0 0.0
    %382 = vmatprep.subr.mxu0 0.0
    %383 = vmatpush1.msra.mxu0 0.0
    %384 = vmatprep.subr.mxu0 0.0
    %385 = vmatpush1.msra.mxu0 0.0
    %386 = vmatprep.subr.mxu0 0.0
    %387 = vmatpush1.msra.mxu0 0.0
    %388 = vmatprep.subr.mxu0 0.0
    %389 = vmatpush1.msra.mxu0 0.0
    %390 = vmatprep.subr.mxu0 0.0
    %391 = vmatpush1.msra.mxu0 0.0
    %392 = vmatprep.subr.mxu0 0.0
    %393 = vmatpush1.msra.mxu0 0.0
    %394 = vmatprep.subr.mxu0 0.0
    %395 = vmatpush1.msra.mxu0 0.0
    %396 = vmatprep.mubr.f32.mxu0 0.0
    %v397 = vand.u32 %v76, 4294901760
    %v398 = vsub.f32 %v76, %v397
    %v399 = vand.u32 %v398, 4294901760
    %400 = vmatmul.mubr.f32.gmra.mrb[0].mxu0 %v399
    %v401 = vpop.f32.mrb[0].mxu0
    %v402 = vadd.f32 %v325, %v401
    %v403 = vpop.f32.mrb[0].mxu0
    %404 = vdwg.mxu0
    %405 = vmatprep.subr.mxu0 0.0
    %v406 = vand.u32 %v70, 4294901760
    %v407 = vsub.f32 %v70, %v406
    %v408 = vand.u32 %v407, 4294901760
    %409 = vmatpush1.msra.mxu0 %v408
    %410 = vmatprep.subr.mxu0 0.0
    %v411 = vand.u32 %v71, 4294901760
    %v412 = vsub.f32 %v71, %v411
    %v413 = vand.u32 %v412, 4294901760
    %414 = vmatpush1.msra.mxu0 %v413
    %415 = vmatprep.subr.mxu0 0.0
    %v416 = vand.u32 %v72, 4294901760
    %v417 = vsub.f32 %v72, %v416
    %v418 = vand.u32 %v417, 4294901760
    %419 = vmatpush1.msra.mxu0 %v418
    %420 = vmatprep.subr.mxu0 0.0
    %v421 = vand.u32 %v73, 4294901760
    %v422 = vsub.f32 %v73, %v421
    %v423 = vand.u32 %v422, 4294901760
    %424 = vmatpush1.msra.mxu0 %v423
    %425 = vmatprep.subr.mxu0 0.0
    %426 = vmatpush1.msra.mxu0 0.0
    %427 = vmatprep.subr.mxu0 0.0
    %428 = vmatpush1.msra.mxu0 0.0
    %429 = vmatprep.subr.mxu0 0.0
    %430 = vmatpush1.msra.mxu0 0.0
    %431 = vmatprep.subr.mxu0 0.0
    %432 = vmatpush1.msra.mxu0 0.0
    %433 = vmatprep.subr.mxu0 0.0
    %434 = vmatpush1.msra.mxu0 0.0
    %435 = vmatprep.subr.mxu0 0.0
    %436 = vmatpush1.msra.mxu0 0.0
    %437 = vmatprep.subr.mxu0 0.0
    %438 = vmatpush1.msra.mxu0 0.0
    %439 = vmatprep.subr.mxu0 0.0
    %440 = vmatpush1.msra.mxu0 0.0
    %441 = vmatprep.subr.mxu0 0.0
    %442 = vmatpush1.msra.mxu0 0.0
    %443 = vmatprep.subr.mxu0 0.0
    %444 = vmatpush1.msra.mxu0 0.0
    %445 = vmatprep.subr.mxu0 0.0
    %446 = vmatpush1.msra.mxu0 0.0
    %447 = vmatprep.subr.mxu0 0.0
    %448 = vmatpush1.msra.mxu0 0.0
    %449 = vmatprep.subr.mxu0 0.0
    %450 = vmatpush1.msra.mxu0 0.0
    %451 = vmatprep.subr.mxu0 0.0
    %452 = vmatpush1.msra.mxu0 0.0
    %453 = vmatprep.subr.mxu0 0.0
    %454 = vmatpush1.msra.mxu0 0.0
    %455 = vmatprep.subr.mxu0 0.0
    %456 = vmatpush1.msra.mxu0 0.0
    %457 = vmatprep.subr.mxu0 0.0
    %458 = vmatpush1.msra.mxu0 0.0
    %459 = vmatprep.subr.mxu0 0.0
    %460 = vmatpush1.msra.mxu0 0.0
    %461 = vmatprep.subr.mxu0 0.0
    %462 = vmatpush1.msra.mxu0 0.0
    %463 = vmatprep.subr.mxu0 0.0
    %464 = vmatpush1.msra.mxu0 0.0
    %465 = vmatprep.subr.mxu0 0.0
    %466 = vmatpush1.msra.mxu0 0.0
    %467 = vmatprep.subr.mxu0 0.0
    %468 = vmatpush1.msra.mxu0 0.0
    %469 = vmatprep.subr.mxu0 0.0
    %470 = vmatpush1.msra.mxu0 0.0
    %471 = vmatprep.subr.mxu0 0.0
    %472 = vmatpush1.msra.mxu0 0.0
    %473 = vmatprep.subr.mxu0 0.0
    %474 = vmatpush1.msra.mxu0 0.0
    %475 = vmatprep.subr.mxu0 0.0
    %476 = vmatpush1.msra.mxu0 0.0
    %477 = vmatprep.subr.mxu0 0.0
    %478 = vmatpush1.msra.mxu0 0.0
    %479 = vmatprep.subr.mxu0 0.0
    %480 = vmatpush1.msra.mxu0 0.0
    %481 = vmatprep.mubr.f32.mxu0 0.0
    %v482 = vand.u32 %v76, 4294901760
    %483 = vmatmul.mubr.f32.gmra.mrb[0].mxu0 %v482
    %v484 = vpop.f32.mrb[0].mxu0
    %v485 = vadd.f32 %v402, %v484
    %v486 = vpop.f32.mrb[0].mxu0
    %487 = vdwg.mxu0
    %488 = vmatprep.subr.mxu0 0.0
    %v489 = vand.u32 %v70, 4294901760
    %490 = vmatpush1.msra.mxu0 %v489
    %491 = vmatprep.subr.mxu0 0.0
    %v492 = vand.u32 %v71, 4294901760
    %493 = vmatpush1.msra.mxu0 %v492
    %494 = vmatprep.subr.mxu0 0.0
    %v495 = vand.u32 %v72, 4294901760
    %496 = vmatpush1.msra.mxu0 %v495
    %497 = vmatprep.subr.mxu0 0.0
    %v498 = vand.u32 %v73, 4294901760
    %499 = vmatpush1.msra.mxu0 %v498
    %500 = vmatprep.subr.mxu0 0.0
    %501 = vmatpush1.msra.mxu0 0.0
    %502 = vmatprep.subr.mxu0 0.0
    %503 = vmatpush1.msra.mxu0 0.0
    %504 = vmatprep.subr.mxu0 0.0
    %505 = vmatpush1.msra.mxu0 0.0
    %506 = vmatprep.subr.mxu0 0.0
    %507 = vmatpush1.msra.mxu0 0.0
    %508 = vmatprep.subr.mxu0 0.0
    %509 = vmatpush1.msra.mxu0 0.0
    %510 = vmatprep.subr.mxu0 0.0
    %511 = vmatpush1.msra.mxu0 0.0
    %512 = vmatprep.subr.mxu0 0.0
    %513 = vmatpush1.msra.mxu0 0.0
    %514 = vmatprep.subr.mxu0 0.0
    %515 = vmatpush1.msra.mxu0 0.0
    %516 = vmatprep.subr.mxu0 0.0
    %517 = vmatpush1.msra.mxu0 0.0
    %518 = vmatprep.subr.mxu0 0.0
    %519 = vmatpush1.msra.mxu0 0.0
    %520 = vmatprep.subr.mxu0 0.0
    %521 = vmatpush1.msra.mxu0 0.0
    %522 = vmatprep.subr.mxu0 0.0
    %523 = vmatpush1.msra.mxu0 0.0
    %524 = vmatprep.subr.mxu0 0.0
    %525 = vmatpush1.msra.mxu0 0.0
    %526 = vmatprep.subr.mxu0 0.0
    %527 = vmatpush1.msra.mxu0 0.0
    %528 = vmatprep.subr.mxu0 0.0
    %529 = vmatpush1.msra.mxu0 0.0
    %530 = vmatprep.subr.mxu0 0.0
    %531 = vmatpush1.msra.mxu0 0.0
    %532 = vmatprep.subr.mxu0 0.0
    %533 = vmatpush1.msra.mxu0 0.0
    %534 = vmatprep.subr.mxu0 0.0
    %535 = vmatpush1.msra.mxu0 0.0
    %536 = vmatprep.subr.mxu0 0.0
    %537 = vmatpush1.msra.mxu0 0.0
    %538 = vmatprep.subr.mxu0 0.0
    %539 = vmatpush1.msra.mxu0 0.0
    %540 = vmatprep.subr.mxu0 0.0
    %541 = vmatpush1.msra.mxu0 0.0
    %542 = vmatprep.subr.mxu0 0.0
    %543 = vmatpush1.msra.mxu0 0.0
    %544 = vmatprep.subr.mxu0 0.0
    %545 = vmatpush1.msra.mxu0 0.0
    %546 = vmatprep.subr.mxu0 0.0
    %547 = vmatpush1.msra.mxu0 0.0
    %548 = vmatprep.subr.mxu0 0.0
    %549 = vmatpush1.msra.mxu0 0.0
    %550 = vmatprep.subr.mxu0 0.0
    %551 = vmatpush1.msra.mxu0 0.0
    %552 = vmatprep.subr.mxu0 0.0
    %553 = vmatpush1.msra.mxu0 0.0
    %554 = vmatprep.subr.mxu0 0.0
    %555 = vmatpush1.msra.mxu0 0.0
    %556 = vmatprep.mubr.f32.mxu0 0.0
    %v557 = vand.u32 %v76, 4294901760
    %558 = vmatmul.mubr.f32.gmra.mrb[0].mxu0 %v557
    %v559 = vpop.f32.mrb[0].mxu0
    %v560 = vadd.f32 %v485, %v559
    %v561 = vpop.f32.mrb[0].mxu0
    %562 = vdwg.mxu0
    %v563 = vmul.f32 %v560, 1.442695
    %v564 = vpow.pop %v563
    %v565 = vld [vmem:[%s3] sm:$0x1]
    %v567 = vlaneseq
    %v568 = vshrl.u32 %v567, 7
    %v569 = vsub.s32 0, %v568
    %v570 = vrot.slane %v565, %v569
    %v572 = vmul.f32 %v564, %v570
    %v573 = vsel %vm74, %v572, 0.0
    %574 = vadd.xlane.f32.xlu0 %v573
    %v575 = vpop.xlane.xlu0 %574
    %s576 = sld [smem:[#allocation2]]
    %v577 = vstv %s576
    %v578 = vadd.f32 %v575, %v577
    %v579 = vxor.u32 %v578, 2147483648
    %v580 = vmul.f32 %v579, 1.442695
    %v581 = vpow.pop %v580
    %v582 = vadd.f32 %v581, 1.0
    %v583 = vrcp.pop %v582
    %v584 = vmul.f32 1.0, %v583
    %vm585 = vcmask 7168
    %586 = vst.msk [vmem:[%s5] sm:$0xff] %vm585, %v584
    %v587 = vsub.f32 1.0, %v584
    %vm588 = vcmask 15368
    %589 = vst.msk [vmem:[%s5] sm:$0xff] %vm588, %v587
    // Predicated region
    $region30: #{tpu_custom_call.1} parent=1 // pred_check
      _
    $region31: #{tpu_custom_call.1} parent=1 // pred_check_branch
      %591 = sbr.rel (0) target = $region33
    $region32: #{tpu_custom_call.1} parent=1 // pred_region
      _
    $region33: #{tpu_custom_call.1} parent=1 // pred_fallthru
      _
    // Predicated region
    $region34: #{tpu_custom_call.1} parent=1 // pred_check
      _
    $region35: #{tpu_custom_call.1} parent=1 // pred_check_branch
      %593 = sbr.rel (0) target = $region37
    $region36: #{tpu_custom_call.1} parent=1 // pred_region
      _
    $region37: #{tpu_custom_call.1} parent=1 // pred_fallthru
      _
    %594 = vsyncpa [#allocation4], 1
    %595 = vsyncpa [#allocation6], 1

</llo_original>
